<compile_context>
chip_gen: v6e
topology: v6e:2x2x1
jax: 0.10.0
libtpu: 0.0.40
codegen_flags: <defaults>
</compile_context>

<pallas_src>
import functools

import jax
import jax.numpy as jnp
from jax import lax
from jax.experimental import pallas as pl
from jax.experimental.pallas import tpu as pltpu


def _round_up(x, m):
    return (x + m - 1) // m * m


# ------------------------------- Pallas kernel -------------------------------

def _make_patch_proj_kernel(K, use_norm, eps=1e-5):
    """Fused per-token projection (+ optional LayerNorm)."""

    def kernel(x_ref, w_ref, b_ref, *rest):
        if use_norm:
            g_ref, beta_ref, o_ref = rest
        else:
            (o_ref,) = rest
        x = x_ref[...]                              # (tm, K)
        w = w_ref[...]                              # (K, Cout)
        tm, cout = x.shape[0], w.shape[1]
        if K <= 8:
            # Tiny contraction dim: unrolled broadcast FMAs on the VPU instead
            # of an MXU dot with K = 4/256 of the systolic contraction dim.
            y = jnp.broadcast_to(b_ref[...], (tm, cout)).astype(jnp.float32)
            for k in range(K):
                y = y + x[:, k:k + 1] * w[k:k + 1, :]
        else:
            y = jnp.dot(x, w, preferred_element_type=jnp.float32) + b_ref[...]
        if use_norm:
            mu = jnp.mean(y, axis=-1, keepdims=True)
            var = jnp.mean((y - mu) ** 2, axis=-1, keepdims=True)
            y = (y - mu) * lax.rsqrt(var + eps) * g_ref[...] + beta_ref[...]
        o_ref[...] = y

    return kernel


def _pallas_patch_proj(x2d, w, b, ln_gamma=None, ln_beta=None, row_tile=256):
    """x2d: (R, K) token-major, w: (K, Cout), b: (Cout,) -> (R, Cout)."""
    R, K = x2d.shape
    Cout = w.shape[1]
    use_norm = ln_gamma is not None

    tm = min(row_tile, _round_up(R, 8))             # sublane-aligned row tile
    R_pad = _round_up(R, tm)
    if R_pad != R:
        x2d = jnp.pad(x2d, ((0, R_pad - R), (0, 0)))

    args = [x2d, w, b.reshape(1, Cout)]
    in_specs = [pl.BlockSpec((tm, K), lambda i: (i, 0)),
                pl.BlockSpec((K, Cout), lambda i: (0, 0)),
                pl.BlockSpec((1, Cout), lambda i: (0, 0))]
    if use_norm:
        args += [ln_gamma.reshape(1, Cout), ln_beta.reshape(1, Cout)]
        in_specs += [pl.BlockSpec((1, Cout), lambda i: (0, 0)),
                     pl.BlockSpec((1, Cout), lambda i: (0, 0))]

    out = pl.pallas_call(
        _make_patch_proj_kernel(K, use_norm),
        out_shape=jax.ShapeDtypeStruct((R_pad, Cout), jnp.float32),
        grid=(R_pad // tm,),
        in_specs=in_specs,
        out_specs=pl.BlockSpec((tm, Cout), lambda i: (i, 0)),
        compiler_params=pltpu.CompilerParams(
            dimension_semantics=("parallel",)),     # v7x: shard row tiles over 2 TCs
    )(*args)
    return out[:R] if R_pad != R else out


# ------------------------------ module forward -------------------------------

def patch_embed_forward(x, w_mat, b, patch_size=1, ln_gamma=None, ln_beta=None):
    """PatchEmbed.forward.

    x: (N, Cin, H, W) NCHW.
    w_mat: (patch_size*patch_size*Cin, embed_dim), flattened in (cin, dy, dx)
           order, i.e. torch_conv_weight.permute(1, 2, 3, 0).reshape(Cin*p*p, Cout).
    b: (embed_dim,).
    Returns (tokens (N, Ho*Wo, embed_dim), Ho, Wo).
    """
    N, Cin, H, W = x.shape
    p = patch_size
    Ho, Wo = H // p, W // p
    # NCHW -> (N*Ho*Wo, p*p*Cin) space-to-depth: plain-JAX layout glue only.
    if p == 1:
        x2d = jnp.transpose(x, (0, 2, 3, 1)).reshape(N * Ho * Wo, Cin)
    else:
        xs = x[:, :, :Ho * p, :Wo * p].reshape(N, Cin, Ho, p, Wo, p)
        x2d = jnp.transpose(xs, (0, 2, 4, 1, 3, 5)).reshape(N * Ho * Wo, Cin * p * p)
    tok = _pallas_patch_proj(x2d, w_mat, b, ln_gamma, ln_beta)
    return tok.reshape(N, Ho * Wo, -1), Ho, Wo


# ----------------------------------- main ------------------------------------

if __name__ == "__main__":
    def run_case(key, N, Cin, H, W, embed_dim, p):
        kx, kw, kb = jax.random.split(key, 3)
        x = jax.random.normal(kx, (N, Cin, H, W), jnp.float32)
        # PyTorch Conv2d weight layout (Cout, Cin, kh, kw); flatten to the
        # (cin, dy, dx) ordering the kernel expects.
        w_conv = 0.1 * jax.random.normal(kw, (embed_dim, Cin, p, p), jnp.float32)
        b = 0.05 * jax.random.normal(kb, (embed_dim,), jnp.float32)
        w_mat = jnp.transpose(w_conv, (1, 2, 3, 0)).reshape(Cin * p * p, embed_dim)

        fwd = jax.jit(functools.partial(patch_embed_forward, patch_size=p))
        tok, Ho, Wo = fwd(x, w_mat, b)
        tok = jax.block_until_ready(tok)
        Ho, Wo = int(Ho), int(Wo)

        # Independent reference: strided conv in XLA, then flatten(2).transpose(1,2).
        ref = lax.conv_general_dilated(
            x, w_conv, window_strides=(p, p), padding="VALID",
            dimension_numbers=("NCHW", "OIHW", "NCHW"))
        ref = ref + b.reshape(1, embed_dim, 1, 1)
        ref = jnp.transpose(ref.reshape(N, embed_dim, Ho * Wo), (0, 2, 1))

        assert (Ho, Wo) == (H // p, W // p), (Ho, Wo)
        assert tok.shape == (N, Ho * Wo, embed_dim), tok.shape
        assert bool(jnp.all(jnp.isfinite(tok)))
        err = float(jnp.max(jnp.abs(tok - ref)))
        assert err < 1e-4, f"max abs err {err}"

    key = jax.random.PRNGKey(0)
    k1, k2 = jax.random.split(key)
    # FocalNet_2D config: in_chans=4, 16x16 input, embed_dim=32, patch_size=1
    # (exercises the VPU broadcast-FMA path, K=4).
    run_case(k1, N=2, Cin=4, H=16, W=16, embed_dim=32, p=1)
    # PatchEmbed default-ish: in_chans=3, embed_dim=96, patch_size=2
    # (exercises the space-to-depth + MXU-dot path, K=12).
    run_case(k2, N=2, Cin=3, H=16, W=16, embed_dim=96, p=2)
    print("KERNEL_OK")
</pallas_src>

<mosaic_0001>
module attributes {stable_mosaic.version = 11 : i64} {
  func.func @kernel(%arg0: i32, %arg1: memref<256x4xf32, #tpu.memory_space<vmem>>, %arg2: memref<4x32xf32, #tpu.memory_space<vmem>>, %arg3: memref<1x32xf32, #tpu.memory_space<vmem>>, %arg4: memref<256x32xf32, #tpu.memory_space<vmem>>) attributes {dimension_semantics = [#tpu.dimension_semantics<parallel>], iteration_bounds = array<i64: 2>, scalar_prefetch = 0 : i64, scratch_operands = 0 : i64, tpu.core_type = #tpu.core_type<tc>, window_params = [{transform_indices = @transform_0, window_bounds = array<i64: 256, 4>}, {pipeline_mode = #tpu.pipeline_mode<synchronous>, transform_indices = @transform_1, window_bounds = array<i64: 4, 32>}, {pipeline_mode = #tpu.pipeline_mode<synchronous>, transform_indices = @transform_2, window_bounds = array<i64: 1, 32>}, {transform_indices = @transform_3, window_bounds = array<i64: 256, 32>}]} {
    %c0 = arith.constant 0 : index
    %c0_0 = arith.constant 0 : index
    %0 = vector.load %arg1[%c0, %c0_0] : memref<256x4xf32, #tpu.memory_space<vmem>>, vector<256x4xf32>
    %c0_1 = arith.constant 0 : index
    %c0_2 = arith.constant 0 : index
    %1 = vector.load %arg2[%c0_1, %c0_2] : memref<4x32xf32, #tpu.memory_space<vmem>>, vector<4x32xf32>
    %c0_3 = arith.constant 0 : index
    %c0_4 = arith.constant 0 : index
    %2 = vector.load %arg3[%c0_3, %c0_4] : memref<1x32xf32, #tpu.memory_space<vmem>>, vector<1x32xf32>
    %3 = vector.shape_cast %2 : vector<1x32xf32> to vector<1x32xf32>
    %4 = vector.broadcast %3 : vector<1x32xf32> to vector<256x32xf32>
    %5 = vector.extract_strided_slice %0 {offsets = [0, 0], sizes = [256, 1], strides = [1, 1]} : vector<256x4xf32> to vector<256x1xf32>
    %6 = vector.extract_strided_slice %1 {offsets = [0, 0], sizes = [1, 32], strides = [1, 1]} : vector<4x32xf32> to vector<1x32xf32>
    %7 = vector.broadcast %5 : vector<256x1xf32> to vector<256x32xf32>
    %8 = vector.broadcast %6 : vector<1x32xf32> to vector<256x32xf32>
    %9 = arith.mulf %7, %8 : vector<256x32xf32>
    %10 = arith.addf %4, %9 : vector<256x32xf32>
    %11 = vector.extract_strided_slice %0 {offsets = [0, 1], sizes = [256, 1], strides = [1, 1]} : vector<256x4xf32> to vector<256x1xf32>
    %12 = vector.extract_strided_slice %1 {offsets = [1, 0], sizes = [1, 32], strides = [1, 1]} : vector<4x32xf32> to vector<1x32xf32>
    %13 = vector.broadcast %11 : vector<256x1xf32> to vector<256x32xf32>
    %14 = vector.broadcast %12 : vector<1x32xf32> to vector<256x32xf32>
    %15 = arith.mulf %13, %14 : vector<256x32xf32>
    %16 = arith.addf %10, %15 : vector<256x32xf32>
    %17 = vector.extract_strided_slice %0 {offsets = [0, 2], sizes = [256, 1], strides = [1, 1]} : vector<256x4xf32> to vector<256x1xf32>
    %18 = vector.extract_strided_slice %1 {offsets = [2, 0], sizes = [1, 32], strides = [1, 1]} : vector<4x32xf32> to vector<1x32xf32>
    %19 = vector.broadcast %17 : vector<256x1xf32> to vector<256x32xf32>
    %20 = vector.broadcast %18 : vector<1x32xf32> to vector<256x32xf32>
    %21 = arith.mulf %19, %20 : vector<256x32xf32>
    %22 = arith.addf %16, %21 : vector<256x32xf32>
    %23 = vector.extract_strided_slice %0 {offsets = [0, 3], sizes = [256, 1], strides = [1, 1]} : vector<256x4xf32> to vector<256x1xf32>
    %24 = vector.extract_strided_slice %1 {offsets = [3, 0], sizes = [1, 32], strides = [1, 1]} : vector<4x32xf32> to vector<1x32xf32>
    %25 = vector.broadcast %23 : vector<256x1xf32> to vector<256x32xf32>
    %26 = vector.broadcast %24 : vector<1x32xf32> to vector<256x32xf32>
    %27 = arith.mulf %25, %26 : vector<256x32xf32>
    %28 = arith.addf %22, %27 : vector<256x32xf32>
    %c0_5 = arith.constant 0 : index
    %c0_6 = arith.constant 0 : index
    %29 = vector.load %arg4[%c0_5, %c0_6] : memref<256x32xf32, #tpu.memory_space<vmem>>, vector<256x32xf32>
    tpu.vector_store %arg4[%c0_5, %c0_6], %28 {strides = array<i32>} : memref<256x32xf32, #tpu.memory_space<vmem>>, vector<256x32xf32>,
    return
  }
  func.func @transform_0(%arg0: i32) -> (i32, i32) {
    %c0_i32 = arith.constant 0 : i32
    %c0_i32_0 = arith.constant 0 : i32
    return %arg0, %c0_i32 : i32, i32
  }
  func.func @transform_1(%arg0: i32) -> (i32, i32) {
    %c0_i32 = arith.constant 0 : i32
    %c0_i32_0 = arith.constant 0 : i32
    %c0_i32_1 = arith.constant 0 : i32
    return %c0_i32, %c0_i32_0 : i32, i32
  }
  func.func @transform_2(%arg0: i32) -> (i32, i32) {
    %c0_i32 = arith.constant 0 : i32
    %c0_i32_0 = arith.constant 0 : i32
    %c0_i32_1 = arith.constant 0 : i32
    return %c0_i32, %c0_i32_0 : i32, i32
  }
  func.func @transform_3(%arg0: i32) -> (i32, i32) {
    %c0_i32 = arith.constant 0 : i32
    %c0_i32_0 = arith.constant 0 : i32
    return %arg0, %c0_i32 : i32, i32
  }
}

</mosaic_0001>

<llo_original>
// kernel: patch_embed_forward.1
$region0: #{patch_embed_forward.1}
  #allocation0 [shape = 'u32[]', space=smem, size = 0x4, offset = 0x4, fixed_abs, tag = 'smem constant byte address 0x4 - core index']
  #allocation1 [shape = 'u32[144,128]{1,0:T(1,128)}', space=vmem, size = 0x12000, scoped, tag = 'internal scratch']
  %s0 = inlined_call_operand.vmem [shape: f32[512,4], index: 0, kind: input, shape index: {}]
  %s1 = inlined_call_operand.vmem [shape: f32[4,32], index: 1, kind: input, shape index: {}]
  %s2 = inlined_call_operand.vmem [shape: f32[1,32], index: 2, kind: input, shape index: {}]
  %s3 = inlined_call_operand.vmem [shape: f32[512,32], index: 3, kind: output, shape index: {}]
  %s4 = sld [smem:[#allocation0]]
  $region45: #{patch_embed_forward.1} parent=0
    _
  %s6 = ssub.s32 1, %s4
  %s7 = scalar_select 0, %s6, %s4
  loop: start=0, step=1, limit=4
  $region2: #{patch_embed_forward.1} parent=0 // loop_pre_header
    _
  $region3: #{patch_embed_forward.1} parent=0 // loop_header
    %s9 = sphi 0, %s13
    %p10 = scmp.ge.s32.totalorder %s9, 4
    %s19 = sphi 0, %s21
    %s22 = sphi 0, %s19
    %s23 = sphi 0, %s22
    %s39 = sphi 0, %s23
    %s43 = sphi 0, %s43
    %s45 = sphi 0, %s43
    %s46 = sphi 0, %s45
    %s60 = sphi 0, %s46
    %s64 = sphi 0, %s64
    %s66 = sphi 0, %s64
    %s67 = sphi 0, %s66
    %s81 = sphi 0, %s67
    %s87 = sphi 0, %s89
    %s90 = sphi 0, %s87
    %s91 = sphi 0, %s90
    %s107 = sphi 0, %s91
  $region4: #{patch_embed_forward.1} parent=0 // loop_header_branch
    %12 = sbr.rel (%p10) target = $region8
  $region5: #{patch_embed_forward.1} parent=0 // loop_body
    %s14 = ssub.s32 %s9, 1
    %s15 = ssub.s32 %s9, 2
    %s16 = sadd.s32 %s9, 1
    %s17 = ssub.s32 %s9, %s16
    %p18 = scmp.eq.s32.totalorder %s17, 0
    %s20 = sadd.s32 %s19, 1
    %s21 = scalar_select %p18, %s19, %s20
    %p24 = pneg %p18
    %p25 = scmp.eq.s32.totalorder %s9, 1
    %p26 = por %p24, %p25
    %p27 = scmp.ne.s32.totalorder %s19, %s22
    %p28 = scmp.eq.s32.totalorder %s9, 0
    %p29 = por %p27, %p28
    %p30 = scmp.ne.s32.totalorder %s19, %s22
    %p31 = scmp.eq.s32.totalorder %s14, 1
    %p32 = por %p30, %p31
    %p33 = scmp.ne.s32.totalorder %s22, %s23
    %p34 = scmp.eq.s32.totalorder %s14, 0
    %p35 = por %p33, %p34
    %p36 = scmp.ne.s32.totalorder %s22, %s23
    %p37 = scmp.eq.s32.totalorder %s15, 1
    %p38 = por %p36, %p37
    %p40 = scmp.ne.s32.totalorder %s23, %s39
    %p41 = scmp.eq.s32.totalorder %s15, 0
    %p42 = por %p40, %p41
    %s44 = sadd.s32 %s43, 1
    %p47 = scmp.eq.s32.totalorder %s9, 1
    %p48 = scmp.ne.s32.totalorder %s43, %s45
    %p49 = scmp.eq.s32.totalorder %s9, 0
    %p50 = por %p48, %p49
    %p51 = scmp.ne.s32.totalorder %s43, %s45
    %p52 = scmp.eq.s32.totalorder %s14, 1
    %p53 = por %p51, %p52
    %p54 = scmp.ne.s32.totalorder %s45, %s46
    %p55 = scmp.eq.s32.totalorder %s14, 0
    %p56 = por %p54, %p55
    %p57 = scmp.ne.s32.totalorder %s45, %s46
    %p58 = scmp.eq.s32.totalorder %s15, 1
    %p59 = por %p57, %p58
    %p61 = scmp.ne.s32.totalorder %s46, %s60
    %p62 = scmp.eq.s32.totalorder %s15, 0
    %p63 = por %p61, %p62
    %s65 = sadd.s32 %s64, 1
    %p68 = scmp.eq.s32.totalorder %s9, 1
    %p69 = scmp.ne.s32.totalorder %s64, %s66
    %p70 = scmp.eq.s32.totalorder %s9, 0
    %p71 = por %p69, %p70
    %p72 = scmp.ne.s32.totalorder %s64, %s66
    %p73 = scmp.eq.s32.totalorder %s14, 1
    %p74 = por %p72, %p73
    %p75 = scmp.ne.s32.totalorder %s66, %s67
    %p76 = scmp.eq.s32.totalorder %s14, 0
    %p77 = por %p75, %p76
    %p78 = scmp.ne.s32.totalorder %s66, %s67
    %p79 = scmp.eq.s32.totalorder %s15, 1
    %p80 = por %p78, %p79
    %p82 = scmp.ne.s32.totalorder %s67, %s81
    %p83 = scmp.eq.s32.totalorder %s15, 0
    %p84 = por %p82, %p83
    %s85 = ssub.s32 %s9, %s16
    %p86 = scmp.eq.s32.totalorder %s85, 0
    %s88 = sadd.s32 %s87, 1
    %s89 = scalar_select %p86, %s87, %s88
    %p92 = pneg %p86
    %p93 = scmp.eq.s32.totalorder %s9, 1
    %p94 = por %p92, %p93
    %p95 = scmp.ne.s32.totalorder %s87, %s90
    %p96 = scmp.eq.s32.totalorder %s9, 0
    %p97 = por %p95, %p96
    %p98 = scmp.ne.s32.totalorder %s87, %s90
    %p99 = scmp.eq.s32.totalorder %s14, 1
    %p100 = por %p98, %p99
    %p101 = scmp.ne.s32.totalorder %s90, %s91
    %p102 = scmp.eq.s32.totalorder %s14, 0
    %p103 = por %p101, %p102
    %p104 = scmp.ne.s32.totalorder %s90, %s91
    %p105 = scmp.eq.s32.totalorder %s15, 1
    %p106 = por %p104, %p105
    %p108 = scmp.ne.s32.totalorder %s91, %s107
    %p109 = scmp.eq.s32.totalorder %s15, 0
    %p110 = por %p108, %p109
    %p111 = scmp.le.s32.totalorder 1, %s9
    %p112 = scmp.lt.s32.totalorder %s9, 3
    %p113 = pnand %p111, %p112
    %p114 = pneg %p113
    // Predicated region
    $region9: #{patch_embed_forward.1} parent=5 // pred_check
      _
    $region10: #{patch_embed_forward.1} parent=5 // pred_check_branch
      %116 = sbr.rel (%p113) target = $region12
    $region11: #{patch_embed_forward.1} parent=5 // pred_region
      %s117 = ssub.s32 %s9, 1
      // Predicated region
      $region13: #{patch_embed_forward.1} parent=11 // pred_check
        %p118 = pneg %p56
      $region14: #{patch_embed_forward.1} parent=11 // pred_check_branch
        %120 = sbr.rel (%p118) target = $region16
      $region15: #{patch_embed_forward.1} parent=11 // pred_region
        _
      $region16: #{patch_embed_forward.1} parent=11 // pred_fallthru
        _
      // Predicated region
      $region17: #{patch_embed_forward.1} parent=11 // pred_check
        %p121 = pneg %p77
      $region18: #{patch_embed_forward.1} parent=11 // pred_check_branch
        %123 = sbr.rel (%p121) target = $region20
      $region19: #{patch_embed_forward.1} parent=11 // pred_region
        _
      $region20: #{patch_embed_forward.1} parent=11 // pred_fallthru
        _
    $region12: #{patch_embed_forward.1} parent=5 // pred_fallthru
      _
    %p124 = scmp.lt.s32.totalorder %s9, 2
    // Predicated region
    $region21: #{patch_embed_forward.1} parent=5 // pred_check
      %p125 = pneg %p124
    $region22: #{patch_embed_forward.1} parent=5 // pred_check_branch
      %127 = sbr.rel (%p125) target = $region24
    $region23: #{patch_embed_forward.1} parent=5 // pred_region
      // Predicated region
      $region25: #{patch_embed_forward.1} parent=23 // pred_check
        %p128 = pneg %p29
      $region26: #{patch_embed_forward.1} parent=23 // pred_check_branch
        %130 = sbr.rel (%p128) target = $region28
      $region27: #{patch_embed_forward.1} parent=23 // pred_region
        %s131 = smul.u32 32, %s9
        %p132 = scmp.lt.s32.totalorder %s131, 63
        %s133 = scalar_select %p132, %s131, 63
        %s134 = smul.addr %s133, 8
        %s135 = scalar_lea.vmem %s0, %s134
        %s136 = smul.u32 32, %s9
      $region28: #{patch_embed_forward.1} parent=23 // pred_fallthru
        _
    $region24: #{patch_embed_forward.1} parent=5 // pred_fallthru
      _
    %p137 = scmp.le.s32.totalorder 1, %s9
    %p138 = scmp.lt.s32.totalorder %s9, 3
    %p139 = pnand %p137, %p138
    %p140 = pneg %p139
    // Predicated region
    $region29: #{patch_embed_forward.1} parent=5 // pred_check
      _
    $region30: #{patch_embed_forward.1} parent=5 // pred_check_branch
      %142 = sbr.rel (%p139) target = $region32
    $region31: #{patch_embed_forward.1} parent=5 // pred_region
      %s143 = ssub.s32 %s9, 1
      %s144 = smul.u32 32, %s14
      %p145 = scmp.lt.s32.totalorder %s144, 63
      %s146 = scalar_select %p145, %s144, 63
      %s147 = smul.addr %s146, 8
      %s148 = scalar_lea.vmem %s0, %s147
      %p149 = pneg %p35
      %p150 = pneg %p32
      %p151 = pneg %p56
      %p152 = pneg %p53
      %p153 = pneg %p77
      %p154 = pneg %p74
      %p155 = pneg %p103
      %p156 = pneg %p100
      %s157 = smul.u32 32, %s14
      %p158 = scmp.lt.s32.totalorder %s157, 63
      %s159 = scalar_select %p158, %s157, 63
      %s160 = smul.addr %s159, 8
      %s161 = scalar_lea.vmem %s3, %s160
      %s162 = smul.u32 32, %s14
      %p163 = scmp.lt.s32.totalorder %s162, 63
      %s164 = scalar_select %p163, %s162, 63
      %s165 = smul.addr %s164, 8
      %s166 = scalar_lea.vmem %s0, %s165
      %s167 = smul.u32 32, %s14
      %s168 = smul.u32 32, %s14
      %p169 = scmp.lt.s32.totalorder %s168, 63
      %s170 = scalar_select %p169, %s168, 63
      %s171 = smul.addr %s170, 8
      %s172 = scalar_lea.vmem %s3, %s171
      %s173 = smul.u32 32, %s14
      %v174 = vld [vmem:[%s166] sm:$0xff]
      %v175 = vld [vmem:[%s166 + $0x8] sm:$0xff]
      %v176 = vld [vmem:[%s166 + $0x10] sm:$0xff]
      %v177 = vld [vmem:[%s166 + $0x18] sm:$0xff]
      %v178 = vld [vmem:[%s166 + $0x20] sm:$0xff]
      %v179 = vld [vmem:[%s166 + $0x28] sm:$0xff]
      %v180 = vld [vmem:[%s166 + $0x30] sm:$0xff]
      %v181 = vld [vmem:[%s166 + $0x38] sm:$0xff]
      %v182 = vld [vmem:[%s166 + $0x40] sm:$0xff]
      %v183 = vld [vmem:[%s166 + $0x48] sm:$0xff]
      %v184 = vld [vmem:[%s166 + $0x50] sm:$0xff]
      %v185 = vld [vmem:[%s166 + $0x58] sm:$0xff]
      %v186 = vld [vmem:[%s166 + $0x60] sm:$0xff]
      %v187 = vld [vmem:[%s166 + $0x68] sm:$0xff]
      %v188 = vld [vmem:[%s166 + $0x70] sm:$0xff]
      %v189 = vld [vmem:[%s166 + $0x78] sm:$0xff]
      %v190 = vld [vmem:[%s166 + $0x80] sm:$0xff]
      %v191 = vld [vmem:[%s166 + $0x88] sm:$0xff]
      %v192 = vld [vmem:[%s166 + $0x90] sm:$0xff]
      %v193 = vld [vmem:[%s166 + $0x98] sm:$0xff]
      %v194 = vld [vmem:[%s166 + $0xa0] sm:$0xff]
      %v195 = vld [vmem:[%s166 + $0xa8] sm:$0xff]
      %v196 = vld [vmem:[%s166 + $0xb0] sm:$0xff]
      %v197 = vld [vmem:[%s166 + $0xb8] sm:$0xff]
      %v198 = vld [vmem:[%s166 + $0xc0] sm:$0xff]
      %v199 = vld [vmem:[%s166 + $0xc8] sm:$0xff]
      %v200 = vld [vmem:[%s166 + $0xd0] sm:$0xff]
      %v201 = vld [vmem:[%s166 + $0xd8] sm:$0xff]
      %v202 = vld [vmem:[%s166 + $0xe0] sm:$0xff]
      %v203 = vld [vmem:[%s166 + $0xe8] sm:$0xff]
      %v204 = vld [vmem:[%s166 + $0xf0] sm:$0xff]
      %v205 = vld [vmem:[%s166 + $0xf8] sm:$0xff]
      %v206 = vld [vmem:[%s1] sm:$0xf]
      %v207 = vld [vmem:[%s2] sm:$0x1]
      %v209 = vlaneseq
      %v210 = vshrl.u32 %v209, 7
      %v211 = vsub.s32 0, %v210
      %v212 = vrot.slane %v207, %v211
      %215 = vset.pattern.permute.xlu0 0
      %216 = vperm.xlu0 %215, %v174
      %v217 = vpop.permute.xlu0 %216
      %220 = vset.pattern.permute.xlu0 0
      %221 = vperm.xlu0 %220, %v175
      %v222 = vpop.permute.xlu0 %221
      %225 = vset.pattern.permute.xlu0 0
      %226 = vperm.xlu0 %225, %v176
      %v227 = vpop.permute.xlu0 %226
      %230 = vset.pattern.permute.xlu0 0
      %231 = vperm.xlu0 %230, %v177
      %v232 = vpop.permute.xlu0 %231
      %235 = vset.pattern.permute.xlu0 0
      %236 = vperm.xlu0 %235, %v178
      %v237 = vpop.permute.xlu0 %236
      %240 = vset.pattern.permute.xlu0 0
      %241 = vperm.xlu0 %240, %v179
      %v242 = vpop.permute.xlu0 %241
      %245 = vset.pattern.permute.xlu0 0
      %246 = vperm.xlu0 %245, %v180
      %v247 = vpop.permute.xlu0 %246
      %250 = vset.pattern.permute.xlu0 0
      %251 = vperm.xlu0 %250, %v181
      %v252 = vpop.permute.xlu0 %251
      %255 = vset.pattern.permute.xlu0 0
      %256 = vperm.xlu0 %255, %v182
      %v257 = vpop.permute.xlu0 %256
      %260 = vset.pattern.permute.xlu0 0
      %261 = vperm.xlu0 %260, %v183
      %v262 = vpop.permute.xlu0 %261
      %265 = vset.pattern.permute.xlu0 0
      %266 = vperm.xlu0 %265, %v184
      %v267 = vpop.permute.xlu0 %266
      %270 = vset.pattern.permute.xlu0 0
      %271 = vperm.xlu0 %270, %v185
      %v272 = vpop.permute.xlu0 %271
      %275 = vset.pattern.permute.xlu0 0
      %276 = vperm.xlu0 %275, %v186
      %v277 = vpop.permute.xlu0 %276
      %280 = vset.pattern.permute.xlu0 0
      %281 = vperm.xlu0 %280, %v187
      %v282 = vpop.permute.xlu0 %281
      %285 = vset.pattern.permute.xlu0 0
      %286 = vperm.xlu0 %285, %v188
      %v287 = vpop.permute.xlu0 %286
      %290 = vset.pattern.permute.xlu0 0
      %291 = vperm.xlu0 %290, %v189
      %v292 = vpop.permute.xlu0 %291
      %295 = vset.pattern.permute.xlu0 0
      %296 = vperm.xlu0 %295, %v190
      %v297 = vpop.permute.xlu0 %296
      %300 = vset.pattern.permute.xlu0 0
      %301 = vperm.xlu0 %300, %v191
      %v302 = vpop.permute.xlu0 %301
      %305 = vset.pattern.permute.xlu0 0
      %306 = vperm.xlu0 %305, %v192
      %v307 = vpop.permute.xlu0 %306
      %310 = vset.pattern.permute.xlu0 0
      %311 = vperm.xlu0 %310, %v193
      %v312 = vpop.permute.xlu0 %311
      %315 = vset.pattern.permute.xlu0 0
      %316 = vperm.xlu0 %315, %v194
      %v317 = vpop.permute.xlu0 %316
      %320 = vset.pattern.permute.xlu0 0
      %321 = vperm.xlu0 %320, %v195
      %v322 = vpop.permute.xlu0 %321
      %325 = vset.pattern.permute.xlu0 0
      %326 = vperm.xlu0 %325, %v196
      %v327 = vpop.permute.xlu0 %326
      %330 = vset.pattern.permute.xlu0 0
      %331 = vperm.xlu0 %330, %v197
      %v332 = vpop.permute.xlu0 %331
      %335 = vset.pattern.permute.xlu0 0
      %336 = vperm.xlu0 %335, %v198
      %v337 = vpop.permute.xlu0 %336
      %340 = vset.pattern.permute.xlu0 0
      %341 = vperm.xlu0 %340, %v199
      %v342 = vpop.permute.xlu0 %341
      %345 = vset.pattern.permute.xlu0 0
      %346 = vperm.xlu0 %345, %v200
      %v347 = vpop.permute.xlu0 %346
      %350 = vset.pattern.permute.xlu0 0
      %351 = vperm.xlu0 %350, %v201
      %v352 = vpop.permute.xlu0 %351
      %355 = vset.pattern.permute.xlu0 0
      %356 = vperm.xlu0 %355, %v202
      %v357 = vpop.permute.xlu0 %356
      %360 = vset.pattern.permute.xlu0 0
      %361 = vperm.xlu0 %360, %v203
      %v362 = vpop.permute.xlu0 %361
      %365 = vset.pattern.permute.xlu0 0
      %366 = vperm.xlu0 %365, %v204
      %v367 = vpop.permute.xlu0 %366
      %370 = vset.pattern.permute.xlu0 0
      %371 = vperm.xlu0 %370, %v205
      %v372 = vpop.permute.xlu0 %371
      %v374 = vlaneseq
      %v375 = vshrl.u32 %v374, 7
      %v376 = vsub.s32 0, %v375
      %v377 = vrot.slane %v206, %v376
      %v378 = vmul.f32 %v217, %v377
      %v379 = vmul.f32 %v222, %v377
      %v380 = vmul.f32 %v227, %v377
      %v381 = vmul.f32 %v232, %v377
      %v382 = vmul.f32 %v237, %v377
      %v383 = vmul.f32 %v242, %v377
      %v384 = vmul.f32 %v247, %v377
      %v385 = vmul.f32 %v252, %v377
      %v386 = vmul.f32 %v257, %v377
      %v387 = vmul.f32 %v262, %v377
      %v388 = vmul.f32 %v267, %v377
      %v389 = vmul.f32 %v272, %v377
      %v390 = vmul.f32 %v277, %v377
      %v391 = vmul.f32 %v282, %v377
      %v392 = vmul.f32 %v287, %v377
      %v393 = vmul.f32 %v292, %v377
      %v394 = vmul.f32 %v297, %v377
      %v395 = vmul.f32 %v302, %v377
      %v396 = vmul.f32 %v307, %v377
      %v397 = vmul.f32 %v312, %v377
      %v398 = vmul.f32 %v317, %v377
      %v399 = vmul.f32 %v322, %v377
      %v400 = vmul.f32 %v327, %v377
      %v401 = vmul.f32 %v332, %v377
      %v402 = vmul.f32 %v337, %v377
      %v403 = vmul.f32 %v342, %v377
      %v404 = vmul.f32 %v347, %v377
      %v405 = vmul.f32 %v352, %v377
      %v406 = vmul.f32 %v357, %v377
      %v407 = vmul.f32 %v362, %v377
      %v408 = vmul.f32 %v367, %v377
      %v409 = vmul.f32 %v372, %v377
      %v410 = vadd.f32 %v212, %v378
      %v411 = vadd.f32 %v212, %v379
      %v412 = vadd.f32 %v212, %v380
      %v413 = vadd.f32 %v212, %v381
      %v414 = vadd.f32 %v212, %v382
      %v415 = vadd.f32 %v212, %v383
      %v416 = vadd.f32 %v212, %v384
      %v417 = vadd.f32 %v212, %v385
      %v418 = vadd.f32 %v212, %v386
      %v419 = vadd.f32 %v212, %v387
      %v420 = vadd.f32 %v212, %v388
      %v421 = vadd.f32 %v212, %v389
      %v422 = vadd.f32 %v212, %v390
      %v423 = vadd.f32 %v212, %v391
      %v424 = vadd.f32 %v212, %v392
      %v425 = vadd.f32 %v212, %v393
      %v426 = vadd.f32 %v212, %v394
      %v427 = vadd.f32 %v212, %v395
      %v428 = vadd.f32 %v212, %v396
      %v429 = vadd.f32 %v212, %v397
      %v430 = vadd.f32 %v212, %v398
      %v431 = vadd.f32 %v212, %v399
      %v432 = vadd.f32 %v212, %v400
      %v433 = vadd.f32 %v212, %v401
      %v434 = vadd.f32 %v212, %v402
      %v435 = vadd.f32 %v212, %v403
      %v436 = vadd.f32 %v212, %v404
      %v437 = vadd.f32 %v212, %v405
      %v438 = vadd.f32 %v212, %v406
      %v439 = vadd.f32 %v212, %v407
      %v440 = vadd.f32 %v212, %v408
      %v441 = vadd.f32 %v212, %v409
      %442 = vset.pattern.permute.xlu0 1
      %443 = vperm.xlu0 %442, %v174
      %v444 = vpop.permute.xlu0 %443
      %446 = vset.pattern.permute.xlu0 1
      %447 = vperm.xlu0 %446, %v175
      %v448 = vpop.permute.xlu0 %447
      %450 = vset.pattern.permute.xlu0 1
      %451 = vperm.xlu0 %450, %v176
      %v452 = vpop.permute.xlu0 %451
      %454 = vset.pattern.permute.xlu0 1
      %455 = vperm.xlu0 %454, %v177
      %v456 = vpop.permute.xlu0 %455
      %458 = vset.pattern.permute.xlu0 1
      %459 = vperm.xlu0 %458, %v178
      %v460 = vpop.permute.xlu0 %459
      %462 = vset.pattern.permute.xlu0 1
      %463 = vperm.xlu0 %462, %v179
      %v464 = vpop.permute.xlu0 %463
      %466 = vset.pattern.permute.xlu0 1
      %467 = vperm.xlu0 %466, %v180
      %v468 = vpop.permute.xlu0 %467
      %470 = vset.pattern.permute.xlu0 1
      %471 = vperm.xlu0 %470, %v181
      %v472 = vpop.permute.xlu0 %471
      %474 = vset.pattern.permute.xlu0 1
      %475 = vperm.xlu0 %474, %v182
      %v476 = vpop.permute.xlu0 %475
      %478 = vset.pattern.permute.xlu0 1
      %479 = vperm.xlu0 %478, %v183
      %v480 = vpop.permute.xlu0 %479
      %482 = vset.pattern.permute.xlu0 1
      %483 = vperm.xlu0 %482, %v184
      %v484 = vpop.permute.xlu0 %483
      %486 = vset.pattern.permute.xlu0 1
      %487 = vperm.xlu0 %486, %v185
      %v488 = vpop.permute.xlu0 %487
      %490 = vset.pattern.permute.xlu0 1
      %491 = vperm.xlu0 %490, %v186
      %v492 = vpop.permute.xlu0 %491
      %494 = vset.pattern.permute.xlu0 1
      %495 = vperm.xlu0 %494, %v187
      %v496 = vpop.permute.xlu0 %495
      %498 = vset.pattern.permute.xlu0 1
      %499 = vperm.xlu0 %498, %v188
      %v500 = vpop.permute.xlu0 %499
      %502 = vset.pattern.permute.xlu0 1
      %503 = vperm.xlu0 %502, %v189
      %v504 = vpop.permute.xlu0 %503
      %506 = vset.pattern.permute.xlu0 1
      %507 = vperm.xlu0 %506, %v190
      %v508 = vpop.permute.xlu0 %507
      %510 = vset.pattern.permute.xlu0 1
      %511 = vperm.xlu0 %510, %v191
      %v512 = vpop.permute.xlu0 %511
      %514 = vset.pattern.permute.xlu0 1
      %515 = vperm.xlu0 %514, %v192
      %v516 = vpop.permute.xlu0 %515
      %518 = vset.pattern.permute.xlu0 1
      %519 = vperm.xlu0 %518, %v193
      %v520 = vpop.permute.xlu0 %519
      %522 = vset.pattern.permute.xlu0 1
      %523 = vperm.xlu0 %522, %v194
      %v524 = vpop.permute.xlu0 %523
      %526 = vset.pattern.permute.xlu0 1
      %527 = vperm.xlu0 %526, %v195
      %v528 = vpop.permute.xlu0 %527
      %530 = vset.pattern.permute.xlu0 1
      %531 = vperm.xlu0 %530, %v196
      %v532 = vpop.permute.xlu0 %531
      %534 = vset.pattern.permute.xlu0 1
      %535 = vperm.xlu0 %534, %v197
      %v536 = vpop.permute.xlu0 %535
      %538 = vset.pattern.permute.xlu0 1
      %539 = vperm.xlu0 %538, %v198
      %v540 = vpop.permute.xlu0 %539
      %542 = vset.pattern.permute.xlu0 1
      %543 = vperm.xlu0 %542, %v199
      %v544 = vpop.permute.xlu0 %543
      %546 = vset.pattern.permute.xlu0 1
      %547 = vperm.xlu0 %546, %v200
      %v548 = vpop.permute.xlu0 %547
      %550 = vset.pattern.permute.xlu0 1
      %551 = vperm.xlu0 %550, %v201
      %v552 = vpop.permute.xlu0 %551
      %554 = vset.pattern.permute.xlu0 1
      %555 = vperm.xlu0 %554, %v202
      %v556 = vpop.permute.xlu0 %555
      %558 = vset.pattern.permute.xlu0 1
      %559 = vperm.xlu0 %558, %v203
      %v560 = vpop.permute.xlu0 %559
      %562 = vset.pattern.permute.xlu0 1
      %563 = vperm.xlu0 %562, %v204
      %v564 = vpop.permute.xlu0 %563
      %566 = vset.pattern.permute.xlu0 1
      %567 = vperm.xlu0 %566, %v205
      %v568 = vpop.permute.xlu0 %567
      %v570 = vlaneseq
      %v571 = vshrl.u32 %v570, 7
      %v572 = vsub.s32 1, %v571
      %v573 = vrot.slane %v206, %v572
      %v574 = vmul.f32 %v444, %v573
      %v575 = vmul.f32 %v448, %v573
      %v576 = vmul.f32 %v452, %v573
      %v577 = vmul.f32 %v456, %v573
      %v578 = vmul.f32 %v460, %v573
      %v579 = vmul.f32 %v464, %v573
      %v580 = vmul.f32 %v468, %v573
      %v581 = vmul.f32 %v472, %v573
      %v582 = vmul.f32 %v476, %v573
      %v583 = vmul.f32 %v480, %v573
      %v584 = vmul.f32 %v484, %v573
      %v585 = vmul.f32 %v488, %v573
      %v586 = vmul.f32 %v492, %v573
      %v587 = vmul.f32 %v496, %v573
      %v588 = vmul.f32 %v500, %v573
      %v589 = vmul.f32 %v504, %v573
      %v590 = vmul.f32 %v508, %v573
      %v591 = vmul.f32 %v512, %v573
      %v592 = vmul.f32 %v516, %v573
      %v593 = vmul.f32 %v520, %v573
      %v594 = vmul.f32 %v524, %v573
      %v595 = vmul.f32 %v528, %v573
      %v596 = vmul.f32 %v532, %v573
      %v597 = vmul.f32 %v536, %v573
      %v598 = vmul.f32 %v540, %v573
      %v599 = vmul.f32 %v544, %v573
      %v600 = vmul.f32 %v548, %v573
      %v601 = vmul.f32 %v552, %v573
      %v602 = vmul.f32 %v556, %v573
      %v603 = vmul.f32 %v560, %v573
      %v604 = vmul.f32 %v564, %v573
      %v605 = vmul.f32 %v568, %v573
      %v606 = vadd.f32 %v410, %v574
      %v607 = vadd.f32 %v411, %v575
      %v608 = vadd.f32 %v412, %v576
      %v609 = vadd.f32 %v413, %v577
      %v610 = vadd.f32 %v414, %v578
      %v611 = vadd.f32 %v415, %v579
      %v612 = vadd.f32 %v416, %v580
      %v613 = vadd.f32 %v417, %v581
      %v614 = vadd.f32 %v418, %v582
      %v615 = vadd.f32 %v419, %v583
      %v616 = vadd.f32 %v420, %v584
      %v617 = vadd.f32 %v421, %v585
      %v618 = vadd.f32 %v422, %v586
      %v619 = vadd.f32 %v423, %v587
      %v620 = vadd.f32 %v424, %v588
      %v621 = vadd.f32 %v425, %v589
      %v622 = vadd.f32 %v426, %v590
      %v623 = vadd.f32 %v427, %v591
      %v624 = vadd.f32 %v428, %v592
      %v625 = vadd.f32 %v429, %v593
      %v626 = vadd.f32 %v430, %v594
      %v627 = vadd.f32 %v431, %v595
      %v628 = vadd.f32 %v432, %v596
      %v629 = vadd.f32 %v433, %v597
      %v630 = vadd.f32 %v434, %v598
      %v631 = vadd.f32 %v435, %v599
      %v632 = vadd.f32 %v436, %v600
      %v633 = vadd.f32 %v437, %v601
      %v634 = vadd.f32 %v438, %v602
      %v635 = vadd.f32 %v439, %v603
      %v636 = vadd.f32 %v440, %v604
      %v637 = vadd.f32 %v441, %v605
      %638 = vset.pattern.permute.xlu0 2
      %639 = vperm.xlu0 %638, %v174
      %v640 = vpop.permute.xlu0 %639
      %642 = vset.pattern.permute.xlu0 2
      %643 = vperm.xlu0 %642, %v175
      %v644 = vpop.permute.xlu0 %643
      %646 = vset.pattern.permute.xlu0 2
      %647 = vperm.xlu0 %646, %v176
      %v648 = vpop.permute.xlu0 %647
      %650 = vset.pattern.permute.xlu0 2
      %651 = vperm.xlu0 %650, %v177
      %v652 = vpop.permute.xlu0 %651
      %654 = vset.pattern.permute.xlu0 2
      %655 = vperm.xlu0 %654, %v178
      %v656 = vpop.permute.xlu0 %655
      %658 = vset.pattern.permute.xlu0 2
      %659 = vperm.xlu0 %658, %v179
      %v660 = vpop.permute.xlu0 %659
      %662 = vset.pattern.permute.xlu0 2
      %663 = vperm.xlu0 %662, %v180
      %v664 = vpop.permute.xlu0 %663
      %666 = vset.pattern.permute.xlu0 2
      %667 = vperm.xlu0 %666, %v181
      %v668 = vpop.permute.xlu0 %667
      %670 = vset.pattern.permute.xlu0 2
      %671 = vperm.xlu0 %670, %v182
      %v672 = vpop.permute.xlu0 %671
      %674 = vset.pattern.permute.xlu0 2
      %675 = vperm.xlu0 %674, %v183
      %v676 = vpop.permute.xlu0 %675
      %678 = vset.pattern.permute.xlu0 2
      %679 = vperm.xlu0 %678, %v184
      %v680 = vpop.permute.xlu0 %679
      %682 = vset.pattern.permute.xlu0 2
      %683 = vperm.xlu0 %682, %v185
      %v684 = vpop.permute.xlu0 %683
      %686 = vset.pattern.permute.xlu0 2
      %687 = vperm.xlu0 %686, %v186
      %v688 = vpop.permute.xlu0 %687
      %690 = vset.pattern.permute.xlu0 2
      %691 = vperm.xlu0 %690, %v187
      %v692 = vpop.permute.xlu0 %691
      %694 = vset.pattern.permute.xlu0 2
      %695 = vperm.xlu0 %694, %v188
      %v696 = vpop.permute.xlu0 %695
      %698 = vset.pattern.permute.xlu0 2
      %699 = vperm.xlu0 %698, %v189
      %v700 = vpop.permute.xlu0 %699
      %702 = vset.pattern.permute.xlu0 2
      %703 = vperm.xlu0 %702, %v190
      %v704 = vpop.permute.xlu0 %703
      %706 = vset.pattern.permute.xlu0 2
      %707 = vperm.xlu0 %706, %v191
      %v708 = vpop.permute.xlu0 %707
      %710 = vset.pattern.permute.xlu0 2
      %711 = vperm.xlu0 %710, %v192
      %v712 = vpop.permute.xlu0 %711
      %714 = vset.pattern.permute.xlu0 2
      %715 = vperm.xlu0 %714, %v193
      %v716 = vpop.permute.xlu0 %715
      %718 = vset.pattern.permute.xlu0 2
      %719 = vperm.xlu0 %718, %v194
      %v720 = vpop.permute.xlu0 %719
      %722 = vset.pattern.permute.xlu0 2
      %723 = vperm.xlu0 %722, %v195
      %v724 = vpop.permute.xlu0 %723
      %726 = vset.pattern.permute.xlu0 2
      %727 = vperm.xlu0 %726, %v196
      %v728 = vpop.permute.xlu0 %727
      %730 = vset.pattern.permute.xlu0 2
      %731 = vperm.xlu0 %730, %v197
      %v732 = vpop.permute.xlu0 %731
      %734 = vset.pattern.permute.xlu0 2
      %735 = vperm.xlu0 %734, %v198
      %v736 = vpop.permute.xlu0 %735
      %738 = vset.pattern.permute.xlu0 2
      %739 = vperm.xlu0 %738, %v199
      %v740 = vpop.permute.xlu0 %739
      %742 = vset.pattern.permute.xlu0 2
      %743 = vperm.xlu0 %742, %v200
      %v744 = vpop.permute.xlu0 %743
      %746 = vset.pattern.permute.xlu0 2
      %747 = vperm.xlu0 %746, %v201
      %v748 = vpop.permute.xlu0 %747
      %750 = vset.pattern.permute.xlu0 2
      %751 = vperm.xlu0 %750, %v202
      %v752 = vpop.permute.xlu0 %751
      %754 = vset.pattern.permute.xlu0 2
      %755 = vperm.xlu0 %754, %v203
      %v756 = vpop.permute.xlu0 %755
      %758 = vset.pattern.permute.xlu0 2
      %759 = vperm.xlu0 %758, %v204
      %v760 = vpop.permute.xlu0 %759
      %762 = vset.pattern.permute.xlu0 2
      %763 = vperm.xlu0 %762, %v205
      %v764 = vpop.permute.xlu0 %763
      %v766 = vlaneseq
      %v767 = vshrl.u32 %v766, 7
      %v768 = vsub.s32 2, %v767
      %v769 = vrot.slane %v206, %v768
      %v770 = vmul.f32 %v640, %v769
      %v771 = vmul.f32 %v644, %v769
      %v772 = vmul.f32 %v648, %v769
      %v773 = vmul.f32 %v652, %v769
      %v774 = vmul.f32 %v656, %v769
      %v775 = vmul.f32 %v660, %v769
      %v776 = vmul.f32 %v664, %v769
      %v777 = vmul.f32 %v668, %v769
      %v778 = vmul.f32 %v672, %v769
      %v779 = vmul.f32 %v676, %v769
      %v780 = vmul.f32 %v680, %v769
      %v781 = vmul.f32 %v684, %v769
      %v782 = vmul.f32 %v688, %v769
      %v783 = vmul.f32 %v692, %v769
      %v784 = vmul.f32 %v696, %v769
      %v785 = vmul.f32 %v700, %v769
      %v786 = vmul.f32 %v704, %v769
      %v787 = vmul.f32 %v708, %v769
      %v788 = vmul.f32 %v712, %v769
      %v789 = vmul.f32 %v716, %v769
      %v790 = vmul.f32 %v720, %v769
      %v791 = vmul.f32 %v724, %v769
      %v792 = vmul.f32 %v728, %v769
      %v793 = vmul.f32 %v732, %v769
      %v794 = vmul.f32 %v736, %v769
      %v795 = vmul.f32 %v740, %v769
      %v796 = vmul.f32 %v744, %v769
      %v797 = vmul.f32 %v748, %v769
      %v798 = vmul.f32 %v752, %v769
      %v799 = vmul.f32 %v756, %v769
      %v800 = vmul.f32 %v760, %v769
      %v801 = vmul.f32 %v764, %v769
      %v802 = vadd.f32 %v606, %v770
      %v803 = vadd.f32 %v607, %v771
      %v804 = vadd.f32 %v608, %v772
      %v805 = vadd.f32 %v609, %v773
      %v806 = vadd.f32 %v610, %v774
      %v807 = vadd.f32 %v611, %v775
      %v808 = vadd.f32 %v612, %v776
      %v809 = vadd.f32 %v613, %v777
      %v810 = vadd.f32 %v614, %v778
      %v811 = vadd.f32 %v615, %v779
      %v812 = vadd.f32 %v616, %v780
      %v813 = vadd.f32 %v617, %v781
      %v814 = vadd.f32 %v618, %v782
      %v815 = vadd.f32 %v619, %v783
      %v816 = vadd.f32 %v620, %v784
      %v817 = vadd.f32 %v621, %v785
      %v818 = vadd.f32 %v622, %v786
      %v819 = vadd.f32 %v623, %v787
      %v820 = vadd.f32 %v624, %v788
      %v821 = vadd.f32 %v625, %v789
      %v822 = vadd.f32 %v626, %v790
      %v823 = vadd.f32 %v627, %v791
      %v824 = vadd.f32 %v628, %v792
      %v825 = vadd.f32 %v629, %v793
      %v826 = vadd.f32 %v630, %v794
      %v827 = vadd.f32 %v631, %v795
      %v828 = vadd.f32 %v632, %v796
      %v829 = vadd.f32 %v633, %v797
      %v830 = vadd.f32 %v634, %v798
      %v831 = vadd.f32 %v635, %v799
      %v832 = vadd.f32 %v636, %v800
      %v833 = vadd.f32 %v637, %v801
      %834 = vset.pattern.permute.xlu0 3
      %835 = vperm.xlu0 %834, %v174
      %v836 = vpop.permute.xlu0 %835
      %838 = vset.pattern.permute.xlu0 3
      %839 = vperm.xlu0 %838, %v175
      %v840 = vpop.permute.xlu0 %839
      %842 = vset.pattern.permute.xlu0 3
      %843 = vperm.xlu0 %842, %v176
      %v844 = vpop.permute.xlu0 %843
      %846 = vset.pattern.permute.xlu0 3
      %847 = vperm.xlu0 %846, %v177
      %v848 = vpop.permute.xlu0 %847
      %850 = vset.pattern.permute.xlu0 3
      %851 = vperm.xlu0 %850, %v178
      %v852 = vpop.permute.xlu0 %851
      %854 = vset.pattern.permute.xlu0 3
      %855 = vperm.xlu0 %854, %v179
      %v856 = vpop.permute.xlu0 %855
      %858 = vset.pattern.permute.xlu0 3
      %859 = vperm.xlu0 %858, %v180
      %v860 = vpop.permute.xlu0 %859
      %862 = vset.pattern.permute.xlu0 3
      %863 = vperm.xlu0 %862, %v181
      %v864 = vpop.permute.xlu0 %863
      %866 = vset.pattern.permute.xlu0 3
      %867 = vperm.xlu0 %866, %v182
      %v868 = vpop.permute.xlu0 %867
      %870 = vset.pattern.permute.xlu0 3
      %871 = vperm.xlu0 %870, %v183
      %v872 = vpop.permute.xlu0 %871
      %874 = vset.pattern.permute.xlu0 3
      %875 = vperm.xlu0 %874, %v184
      %v876 = vpop.permute.xlu0 %875
      %878 = vset.pattern.permute.xlu0 3
      %879 = vperm.xlu0 %878, %v185
      %v880 = vpop.permute.xlu0 %879
      %882 = vset.pattern.permute.xlu0 3
      %883 = vperm.xlu0 %882, %v186
      %v884 = vpop.permute.xlu0 %883
      %886 = vset.pattern.permute.xlu0 3
      %887 = vperm.xlu0 %886, %v187
      %v888 = vpop.permute.xlu0 %887
      %890 = vset.pattern.permute.xlu0 3
      %891 = vperm.xlu0 %890, %v188
      %v892 = vpop.permute.xlu0 %891
      %894 = vset.pattern.permute.xlu0 3
      %895 = vperm.xlu0 %894, %v189
      %v896 = vpop.permute.xlu0 %895
      %898 = vset.pattern.permute.xlu0 3
      %899 = vperm.xlu0 %898, %v190
      %v900 = vpop.permute.xlu0 %899
      %902 = vset.pattern.permute.xlu0 3
      %903 = vperm.xlu0 %902, %v191
      %v904 = vpop.permute.xlu0 %903
      %906 = vset.pattern.permute.xlu0 3
      %907 = vperm.xlu0 %906, %v192
      %v908 = vpop.permute.xlu0 %907
      %910 = vset.pattern.permute.xlu0 3
      %911 = vperm.xlu0 %910, %v193
      %v912 = vpop.permute.xlu0 %911
      %914 = vset.pattern.permute.xlu0 3
      %915 = vperm.xlu0 %914, %v194
      %v916 = vpop.permute.xlu0 %915
      %918 = vset.pattern.permute.xlu0 3
      %919 = vperm.xlu0 %918, %v195
      %v920 = vpop.permute.xlu0 %919
      %922 = vset.pattern.permute.xlu0 3
      %923 = vperm.xlu0 %922, %v196
      %v924 = vpop.permute.xlu0 %923
      %926 = vset.pattern.permute.xlu0 3
      %927 = vperm.xlu0 %926, %v197
      %v928 = vpop.permute.xlu0 %927
      %930 = vset.pattern.permute.xlu0 3
      %931 = vperm.xlu0 %930, %v198
      %v932 = vpop.permute.xlu0 %931
      %934 = vset.pattern.permute.xlu0 3
      %935 = vperm.xlu0 %934, %v199
      %v936 = vpop.permute.xlu0 %935
      %938 = vset.pattern.permute.xlu0 3
      %939 = vperm.xlu0 %938, %v200
      %v940 = vpop.permute.xlu0 %939
      %942 = vset.pattern.permute.xlu0 3
      %943 = vperm.xlu0 %942, %v201
      %v944 = vpop.permute.xlu0 %943
      %946 = vset.pattern.permute.xlu0 3
      %947 = vperm.xlu0 %946, %v202
      %v948 = vpop.permute.xlu0 %947
      %950 = vset.pattern.permute.xlu0 3
      %951 = vperm.xlu0 %950, %v203
      %v952 = vpop.permute.xlu0 %951
      %954 = vset.pattern.permute.xlu0 3
      %955 = vperm.xlu0 %954, %v204
      %v956 = vpop.permute.xlu0 %955
      %958 = vset.pattern.permute.xlu0 3
      %959 = vperm.xlu0 %958, %v205
      %v960 = vpop.permute.xlu0 %959
      %v962 = vlaneseq
      %v963 = vshrl.u32 %v962, 7
      %v964 = vsub.s32 3, %v963
      %v965 = vrot.slane %v206, %v964
      %v966 = vmul.f32 %v836, %v965
      %v967 = vmul.f32 %v840, %v965
      %v968 = vmul.f32 %v844, %v965
      %v969 = vmul.f32 %v848, %v965
      %v970 = vmul.f32 %v852, %v965
      %v971 = vmul.f32 %v856, %v965
      %v972 = vmul.f32 %v860, %v965
      %v973 = vmul.f32 %v864, %v965
      %v974 = vmul.f32 %v868, %v965
      %v975 = vmul.f32 %v872, %v965
      %v976 = vmul.f32 %v876, %v965
      %v977 = vmul.f32 %v880, %v965
      %v978 = vmul.f32 %v884, %v965
      %v979 = vmul.f32 %v888, %v965
      %v980 = vmul.f32 %v892, %v965
      %v981 = vmul.f32 %v896, %v965
      %v982 = vmul.f32 %v900, %v965
      %v983 = vmul.f32 %v904, %v965
      %v984 = vmul.f32 %v908, %v965
      %v985 = vmul.f32 %v912, %v965
      %v986 = vmul.f32 %v916, %v965
      %v987 = vmul.f32 %v920, %v965
      %v988 = vmul.f32 %v924, %v965
      %v989 = vmul.f32 %v928, %v965
      %v990 = vmul.f32 %v932, %v965
      %v991 = vmul.f32 %v936, %v965
      %v992 = vmul.f32 %v940, %v965
      %v993 = vmul.f32 %v944, %v965
      %v994 = vmul.f32 %v948, %v965
      %v995 = vmul.f32 %v952, %v965
      %v996 = vmul.f32 %v956, %v965
      %v997 = vmul.f32 %v960, %v965
      %v998 = vadd.f32 %v802, %v966
      %v999 = vadd.f32 %v803, %v967
      %v1000 = vadd.f32 %v804, %v968
      %v1001 = vadd.f32 %v805, %v969
      %v1002 = vadd.f32 %v806, %v970
      %v1003 = vadd.f32 %v807, %v971
      %v1004 = vadd.f32 %v808, %v972
      %v1005 = vadd.f32 %v809, %v973
      %v1006 = vadd.f32 %v810, %v974
      %v1007 = vadd.f32 %v811, %v975
      %v1008 = vadd.f32 %v812, %v976
      %v1009 = vadd.f32 %v813, %v977
      %v1010 = vadd.f32 %v814, %v978
      %v1011 = vadd.f32 %v815, %v979
      %v1012 = vadd.f32 %v816, %v980
      %v1013 = vadd.f32 %v817, %v981
      %v1014 = vadd.f32 %v818, %v982
      %v1015 = vadd.f32 %v819, %v983
      %v1016 = vadd.f32 %v820, %v984
      %v1017 = vadd.f32 %v821, %v985
      %v1018 = vadd.f32 %v822, %v986
      %v1019 = vadd.f32 %v823, %v987
      %v1020 = vadd.f32 %v824, %v988
      %v1021 = vadd.f32 %v825, %v989
      %v1022 = vadd.f32 %v826, %v990
      %v1023 = vadd.f32 %v827, %v991
      %v1024 = vadd.f32 %v828, %v992
      %v1025 = vadd.f32 %v829, %v993
      %v1026 = vadd.f32 %v830, %v994
      %v1027 = vadd.f32 %v831, %v995
      %v1028 = vadd.f32 %v832, %v996
      %v1029 = vadd.f32 %v833, %v997
      %vm1030 = vcmask 261120
      %1031 = vst.msk [vmem:[%s172] sm:$0xff] %vm1030, %v998
      %1032 = vst.msk [vmem:[%s172 + $0x8] sm:$0xff] %vm1030, %v999
      %1033 = vst.msk [vmem:[%s172 + $0x10] sm:$0xff] %vm1030, %v1000
      %1034 = vst.msk [vmem:[%s172 + $0x18] sm:$0xff] %vm1030, %v1001
      %1035 = vst.msk [vmem:[%s172 + $0x20] sm:$0xff] %vm1030, %v1002
      %1036 = vst.msk [vmem:[%s172 + $0x28] sm:$0xff] %vm1030, %v1003
      %1037 = vst.msk [vmem:[%s172 + $0x30] sm:$0xff] %vm1030, %v1004
      %1038 = vst.msk [vmem:[%s172 + $0x38] sm:$0xff] %vm1030, %v1005
      %1039 = vst.msk [vmem:[%s172 + $0x40] sm:$0xff] %vm1030, %v1006
      %1040 = vst.msk [vmem:[%s172 + $0x48] sm:$0xff] %vm1030, %v1007
      %1041 = vst.msk [vmem:[%s172 + $0x50] sm:$0xff] %vm1030, %v1008
      %1042 = vst.msk [vmem:[%s172 + $0x58] sm:$0xff] %vm1030, %v1009
      %1043 = vst.msk [vmem:[%s172 + $0x60] sm:$0xff] %vm1030, %v1010
      %1044 = vst.msk [vmem:[%s172 + $0x68] sm:$0xff] %vm1030, %v1011
      %1045 = vst.msk [vmem:[%s172 + $0x70] sm:$0xff] %vm1030, %v1012
      %1046 = vst.msk [vmem:[%s172 + $0x78] sm:$0xff] %vm1030, %v1013
      %1047 = vst.msk [vmem:[%s172 + $0x80] sm:$0xff] %vm1030, %v1014
      %1048 = vst.msk [vmem:[%s172 + $0x88] sm:$0xff] %vm1030, %v1015
      %1049 = vst.msk [vmem:[%s172 + $0x90] sm:$0xff] %vm1030, %v1016
      %1050 = vst.msk [vmem:[%s172 + $0x98] sm:$0xff] %vm1030, %v1017
      %1051 = vst.msk [vmem:[%s172 + $0xa0] sm:$0xff] %vm1030, %v1018
      %1052 = vst.msk [vmem:[%s172 + $0xa8] sm:$0xff] %vm1030, %v1019
      %1053 = vst.msk [vmem:[%s172 + $0xb0] sm:$0xff] %vm1030, %v1020
      %1054 = vst.msk [vmem:[%s172 + $0xb8] sm:$0xff] %vm1030, %v1021
      %1055 = vst.msk [vmem:[%s172 + $0xc0] sm:$0xff] %vm1030, %v1022
      %1056 = vst.msk [vmem:[%s172 + $0xc8] sm:$0xff] %vm1030, %v1023
      %1057 = vst.msk [vmem:[%s172 + $0xd0] sm:$0xff] %vm1030, %v1024
      %1058 = vst.msk [vmem:[%s172 + $0xd8] sm:$0xff] %vm1030, %v1025
      %1059 = vst.msk [vmem:[%s172 + $0xe0] sm:$0xff] %vm1030, %v1026
      %1060 = vst.msk [vmem:[%s172 + $0xe8] sm:$0xff] %vm1030, %v1027
      %1061 = vst.msk [vmem:[%s172 + $0xf0] sm:$0xff] %vm1030, %v1028
      %1062 = vst.msk [vmem:[%s172 + $0xf8] sm:$0xff] %vm1030, %v1029
      %s1063 = smul.u32 32, %s14
      %p1064 = scmp.lt.s32.totalorder %s1063, 63
      %s1065 = scalar_select %p1064, %s1063, 63
      %s1066 = smul.addr %s1065, 8
      %s1067 = scalar_lea.vmem %s3, %s1066
      // Predicated region
      $region33: #{patch_embed_forward.1} parent=31 // pred_check
        %p1068 = pneg %p100
      $region34: #{patch_embed_forward.1} parent=31 // pred_check_branch
        %1070 = sbr.rel (%p1068) target = $region36
      $region35: #{patch_embed_forward.1} parent=31 // pred_region
        %s1071 = smul.u32 32, %s14
      $region36: #{patch_embed_forward.1} parent=31 // pred_fallthru
        _
    $region32: #{patch_embed_forward.1} parent=5 // pred_fallthru
      _
    %p1072 = scmp.le.s32.totalorder 2, %s9
    // Predicated region
    $region37: #{patch_embed_forward.1} parent=5 // pred_check
      %p1073 = pneg %p1072
    $region38: #{patch_embed_forward.1} parent=5 // pred_check_branch
      %1075 = sbr.rel (%p1073) target = $region40
    $region39: #{patch_embed_forward.1} parent=5 // pred_region
      %s1076 = ssub.s32 %s9, 2
      // Predicated region
      $region41: #{patch_embed_forward.1} parent=39 // pred_check
        %p1077 = pneg %p106
      $region42: #{patch_embed_forward.1} parent=39 // pred_check_branch
        %1079 = sbr.rel (%p1077) target = $region44
      $region43: #{patch_embed_forward.1} parent=39 // pred_region
        %s1080 = smul.u32 32, %s15
        %p1081 = scmp.lt.s32.totalorder %s1080, 63
        %s1082 = scalar_select %p1081, %s1080, 63
        %s1083 = smul.addr %s1082, 8
        %s1084 = scalar_lea.vmem %s3, %s1083
      $region44: #{patch_embed_forward.1} parent=39 // pred_fallthru
        _
    $region40: #{patch_embed_forward.1} parent=5 // pred_fallthru
      _
  $region6: #{patch_embed_forward.1} parent=0 // loop_footer
    %s13 = sadd.s32 1, %s9
  $region7: #{patch_embed_forward.1} parent=0 // loop_footer_branch
    %8 = sbr.rel target = $region3
  $region8: #{patch_embed_forward.1} parent=0 // loop_exit
    _

</llo_original>
